<compile_context>
chip_gen: v5e
topology: v5e:2x2
jax: 0.10.0
libtpu: 0.0.40
codegen_flags: <defaults>
</compile_context>

<pallas_src>
import jax
import jax.numpy as jnp
from jax.experimental import pallas as pl
from jax.experimental.pallas import tpu as pltpu


# ------------------------------- kernels -------------------------------

def _kron_prop_kernel(k_ref, b_ref, x_ref, o_ref):
    """Fused propagation + 1x1 conv as one 2-D MXU matmul.
    k: [C_out*V, C_in*V], b: [C_out*V, 1], x: [1, C_in*V, Lt], o: [1, C_out*V, Lt]."""
    o_ref[0] = (
        jnp.dot(k_ref[...], x_ref[0], preferred_element_type=jnp.float32)
        + b_ref[...]
    ).astype(o_ref.dtype)


def _propagate_kernel(p_ref, x_ref, h_ref):
    """Graph propagation only.  p: [V, V], x: [1, V, Lt], h: [1, V, Lt]."""
    h_ref[0] = jnp.dot(
        p_ref[...], x_ref[0], preferred_element_type=jnp.float32
    ).astype(h_ref.dtype)


def _conv1x1_kernel(w_ref, b_ref, h_ref, o_ref):
    """1x1 conv (channel mix).  w: [C_out, C_in], b: [C_out, 1],
    h: [1, C_in, VLt], o: [1, C_out, VLt]."""
    o_ref[0] = (
        jnp.dot(w_ref[...], h_ref[0], preferred_element_type=jnp.float32)
        + b_ref[...]
    ).astype(o_ref.dtype)


# ------------------------------- wrapper --------------------------------

def _pick_tile(total, other_steps, candidates=(1024, 512, 256, 128), min_steps=4):
    """Largest lane tile (multiple of 128) dividing `total` that still yields
    >= min_steps total grid steps; falls back to largest divisor, else full."""
    best = None
    for t in candidates:
        if total % t == 0:
            if best is None:
                best = t
            if (total // t) * other_steps >= min_steps:
                return t
    return best if best is not None else total


def _maybe_vmem_limit(bytes_needed):
    """Only override the scoped-VMEM default when the working set is big
    (stays on compiler defaults for small shapes; capped below v7x physical)."""
    if bytes_needed > 12 * 1024 * 1024:
        return min(int(bytes_needed * 2), 56 * 1024 * 1024)
    return None


def prop_forward(x, adj, weight, bias, *, gdep, alpha, dtype=None, kron_max_v=32):
    """x: [N, C_in, V, L] (NCHW), adj: [V, V], weight: [C_out, C_in], bias: [C_out]."""
    N, C_in, V, L = x.shape
    C_out = weight.shape[0]
    dtype = x.dtype if dtype is None else jnp.dtype(dtype)
    itemsize = jnp.dtype(dtype).itemsize

    # ---- tiny wrapper precompute: effective propagation operator P (f32) ----
    a = adj.astype(jnp.float32) + jnp.eye(V, dtype=jnp.float32)
    a = a / jnp.sum(a, axis=1, keepdims=True)          # row-normalize
    m = (1.0 - alpha) * a
    eye = jnp.eye(V, dtype=jnp.float32)
    p = eye                                            # T_0 = I
    for _ in range(int(gdep)):                         # gdep is small & static
        p = alpha * eye + m @ p                        # T_{k+1}

    x = x.astype(dtype)
    bias_f = bias.astype(jnp.float32)

    if V <= kron_max_v:
        # -------- small-V path: kron-fused single matmul per grid step --------
        k_mat = jnp.kron(weight.astype(jnp.float32), p).astype(dtype)  # [C_out*V, C_in*V]
        b2d = jnp.repeat(bias_f, V).reshape(C_out * V, 1).astype(dtype)
        x2 = x.reshape(N, C_in * V, L)                 # free contiguous merge

        lt = _pick_tile(L, other_steps=N)
        grid = (N, L // lt)

        resident = (k_mat.size + b2d.size) * itemsize
        stream = 2 * (C_in * V + C_out * V) * lt * itemsize   # double-buffered blocks
        vmem_limit = _maybe_vmem_limit(resident + stream)
        cparams = dict(dimension_semantics=("parallel", "parallel"))
        if vmem_limit is not None:
            cparams["vmem_limit_bytes"] = vmem_limit

        cost = pl.CostEstimate(
            flops=2 * N * (C_out * V) * (C_in * V) * L,
            transcendentals=0,
            bytes_accessed=(x2.size + N * C_out * V * L + k_mat.size) * itemsize,
        )

        out2 = pl.pallas_call(
            _kron_prop_kernel,
            out_shape=jax.ShapeDtypeStruct((N, C_out * V, L), dtype),
            grid=grid,
            in_specs=[
                pl.BlockSpec((C_out * V, C_in * V), lambda n, l: (0, 0)),  # K (VMEM-resident)
                pl.BlockSpec((C_out * V, 1), lambda n, l: (0, 0)),         # bias (resident)
                pl.BlockSpec((1, C_in * V, lt), lambda n, l: (n, 0, l)),   # x stream
            ],
            out_specs=pl.BlockSpec((1, C_out * V, lt), lambda n, l: (n, 0, l)),
            compiler_params=pltpu.CompilerParams(**cparams),
            cost_estimate=cost,
        )(k_mat, b2d, x2)
        return out2.reshape(N, C_out, V, L)            # free contiguous split

    # -------- larger-V path: factored (P then W), no kron FLOP/memory blow-up --------
    p_mat = p.astype(dtype)
    w_mat = weight.astype(jnp.float32).astype(dtype)
    b2d = bias_f.reshape(C_out, 1).astype(dtype)

    # Stage 1: graph propagation — one [V,V] @ [V,Lt] matmul per (n*c, l-tile).
    x3 = x.reshape(N * C_in, V, L)                     # free contiguous merge
    lt = _pick_tile(L, other_steps=N * C_in)
    grid1 = (N * C_in, L // lt)
    vmem1 = _maybe_vmem_limit(p_mat.size * itemsize + 4 * V * lt * itemsize)
    cp1 = dict(dimension_semantics=("parallel", "parallel"))
    if vmem1 is not None:
        cp1["vmem_limit_bytes"] = vmem1
    h3 = pl.pallas_call(
        _propagate_kernel,
        out_shape=jax.ShapeDtypeStruct((N * C_in, V, L), dtype),
        grid=grid1,
        in_specs=[
            pl.BlockSpec((V, V), lambda i, l: (0, 0)),
            pl.BlockSpec((1, V, lt), lambda i, l: (i, 0, l)),
        ],
        out_specs=pl.BlockSpec((1, V, lt), lambda i, l: (i, 0, l)),
        compiler_params=pltpu.CompilerParams(**cp1),
        cost_estimate=pl.CostEstimate(
            flops=2 * N * C_in * V * V * L,
            transcendentals=0,
            bytes_accessed=(2 * N * C_in * V * L + V * V) * itemsize),
    )(p_mat, x3)

    # Stage 2: 1x1 conv (channel mix) on the (V*L)-merged lane axis.
    # TODO(synk): at extreme shapes fuse stages 1+2 into one kernel with a VMEM
    # scratch to avoid the intermediate h HBM round-trip.
    h2 = h3.reshape(N, C_in, V * L)                    # free contiguous merge
    vlt = _pick_tile(V * L, other_steps=N,
                     candidates=(4096, 2048, 1024, 512, 256, 128))
    grid2 = (N, (V * L) // vlt)
    vmem2 = _maybe_vmem_limit((w_mat.size + b2d.size) * itemsize
                              + 2 * (C_in + C_out) * vlt * itemsize)
    cp2 = dict(dimension_semantics=("parallel", "parallel"))
    if vmem2 is not None:
        cp2["vmem_limit_bytes"] = vmem2
    out2 = pl.pallas_call(
        _conv1x1_kernel,
        out_shape=jax.ShapeDtypeStruct((N, C_out, V * L), dtype),
        grid=grid2,
        in_specs=[
            pl.BlockSpec((C_out, C_in), lambda n, j: (0, 0)),
            pl.BlockSpec((C_out, 1), lambda n, j: (0, 0)),
            pl.BlockSpec((1, C_in, vlt), lambda n, j: (n, 0, j)),
        ],
        out_specs=pl.BlockSpec((1, C_out, vlt), lambda n, j: (n, 0, j)),
        compiler_params=pltpu.CompilerParams(**cp2),
        cost_estimate=pl.CostEstimate(
            flops=2 * N * C_out * C_in * V * L,
            transcendentals=0,
            bytes_accessed=(N * (C_in + C_out) * V * L + C_out * C_in) * itemsize),
    )(w_mat, b2d, h2)
    return out2.reshape(N, C_out, V, L)                # free contiguous split


def prop_reference(x, adj, weight, bias, *, gdep, alpha):
    """Pure-JAX reference mirroring the PyTorch module."""
    V = adj.shape[0]
    a = adj + jnp.eye(V, dtype=adj.dtype)
    d = a.sum(1)
    a = a / d[:, None]
    h = x
    for _ in range(gdep):
        h = alpha * x + (1.0 - alpha) * jnp.einsum('ncwl,vw->ncvl', h, a)
    return jnp.einsum('oc,ncvl->novl', weight, h) + bias[None, :, None, None]


if __name__ == "__main__":
    # module hyper-params (dropout unused in the PyTorch forward)
    C_IN, C_OUT, GDEP, ALPHA = 8, 16, 2, 0.05

    key = jax.random.PRNGKey(0)
    kx, ka, kw, kb = jax.random.split(key, 4)

    weight = 0.1 * jax.random.normal(kw, (C_OUT, C_IN), dtype=jnp.float32)
    bias = 0.1 * jax.random.normal(kb, (C_OUT,), dtype=jnp.float32)

    # --- small-V shape: exercises the kron-fused single-matmul path ---
    N, V, L = 2, 16, 512
    x = jax.random.normal(kx, (N, C_IN, V, L), dtype=jnp.float32)
    adj = jax.random.uniform(ka, (V, V), dtype=jnp.float32)

    out = jax.block_until_ready(
        prop_forward(x, adj, weight, bias, gdep=GDEP, alpha=ALPHA))
    ref = prop_reference(x, adj, weight, bias, gdep=GDEP, alpha=ALPHA)
    assert out.shape == (N, C_OUT, V, L)
    assert jnp.allclose(out, ref, rtol=1e-4, atol=1e-4), "f32 kron path mismatch"

    # bf16-streamed variant (f32 MXU accumulation; looser tolerance).
    out_bf16 = jax.block_until_ready(
        prop_forward(x, adj, weight, bias, gdep=GDEP, alpha=ALPHA,
                     dtype=jnp.bfloat16))
    assert jnp.allclose(out_bf16.astype(jnp.float32), ref,
                        rtol=5e-2, atol=5e-2), "bf16 kron path mismatch"

    # --- larger-V shape: exercises the factored (P then W) path ---
    N2, V2, L2 = 2, 64, 256
    x2 = jax.random.normal(kx, (N2, C_IN, V2, L2), dtype=jnp.float32)
    adj2 = jax.random.uniform(ka, (V2, V2), dtype=jnp.float32)
    out_f = jax.block_until_ready(
        prop_forward(x2, adj2, weight, bias, gdep=GDEP, alpha=ALPHA))
    ref_f = prop_reference(x2, adj2, weight, bias, gdep=GDEP, alpha=ALPHA)
    assert out_f.shape == (N2, C_OUT, V2, L2)
    assert jnp.allclose(out_f, ref_f, rtol=1e-4, atol=1e-4), "factored path mismatch"

    print("KERNEL_OK")
</pallas_src>

<mosaic_0001>
module attributes {stable_mosaic.version = 11 : i64} {
  func.func @_kron_prop_kernel(%arg0: i32, %arg1: i32, %arg2: memref<256x128xf32, #tpu.memory_space<vmem>>, %arg3: memref<256x1xf32, #tpu.memory_space<vmem>>, %arg4: memref<1x128x256xf32, #tpu.memory_space<vmem>>, %arg5: memref<1x256x256xf32, #tpu.memory_space<vmem>>) attributes {dimension_semantics = [#tpu.dimension_semantics<parallel>, #tpu.dimension_semantics<parallel>], iteration_bounds = array<i64: 2, 2>, scalar_prefetch = 0 : i64, scratch_operands = 0 : i64, tpu.core_type = #tpu.core_type<tc>, window_params = [{pipeline_mode = #tpu.pipeline_mode<synchronous>, transform_indices = @transform_0, window_bounds = array<i64: 256, 128>}, {pipeline_mode = #tpu.pipeline_mode<synchronous>, transform_indices = @transform_1, window_bounds = array<i64: 256, 1>}, {transform_indices = @transform_2, window_bounds = array<i64: 1, 128, 256>}, {transform_indices = @transform_3, window_bounds = array<i64: 1, 256, 256>}]} {
    %c0 = arith.constant 0 : index
    %c0_0 = arith.constant 0 : index
    %0 = vector.load %arg2[%c0, %c0_0] : memref<256x128xf32, #tpu.memory_space<vmem>>, vector<256x128xf32>
    %c0_1 = arith.constant 0 : index
    %c0_2 = arith.constant 0 : index
    %c0_3 = arith.constant 0 : index
    %1 = vector.load %arg4[%c0_1, %c0_2, %c0_3] : memref<1x128x256xf32, #tpu.memory_space<vmem>>, vector<1x128x256xf32>
    %2 = vector.shape_cast %1 : vector<1x128x256xf32> to vector<128x256xf32>
    %cst = arith.constant dense<0.000000e+00> : vector<256x256xf32>
    %3 = tpu.matmul %0, %2, %cst {dimension_numbers = #tpu.dot_dimension_numbers<[1], [0], [0], [1], [0, 0, 1, 1], [], []>} : vector<256x128xf32>, vector<128x256xf32>, vector<256x256xf32> -> vector<256x256xf32>
    %c0_4 = arith.constant 0 : index
    %c0_5 = arith.constant 0 : index
    %4 = vector.load %arg3[%c0_4, %c0_5] : memref<256x1xf32, #tpu.memory_space<vmem>>, vector<256x1xf32>
    %5 = vector.broadcast %4 : vector<256x1xf32> to vector<256x256xf32>
    %6 = arith.addf %3, %5 : vector<256x256xf32>
    %c0_6 = arith.constant 0 : index
    %c0_7 = arith.constant 0 : index
    %c0_8 = arith.constant 0 : index
    %7 = vector.load %arg5[%c0_6, %c0_7, %c0_8] : memref<1x256x256xf32, #tpu.memory_space<vmem>>, vector<1x256x256xf32>
    %8 = vector.shape_cast %7 : vector<1x256x256xf32> to vector<256x256xf32>
    %9 = vector.shape_cast %6 : vector<256x256xf32> to vector<1x256x256xf32>
    tpu.vector_store %arg5[%c0_6, %c0_7, %c0_8], %9 {strides = array<i32>} : memref<1x256x256xf32, #tpu.memory_space<vmem>>, vector<1x256x256xf32>,
    return
  }
  func.func @transform_0(%arg0: i32, %arg1: i32) -> (i32, i32) {
    %c0_i32 = arith.constant 0 : i32
    %c0_i32_0 = arith.constant 0 : i32
    %c0_i32_1 = arith.constant 0 : i32
    return %c0_i32, %c0_i32_0 : i32, i32
  }
  func.func @transform_1(%arg0: i32, %arg1: i32) -> (i32, i32) {
    %c0_i32 = arith.constant 0 : i32
    %c0_i32_0 = arith.constant 0 : i32
    %c0_i32_1 = arith.constant 0 : i32
    return %c0_i32, %c0_i32_0 : i32, i32
  }
  func.func @transform_2(%arg0: i32, %arg1: i32) -> (i32, i32, i32) {
    %c0_i32 = arith.constant 0 : i32
    %c0_i32_0 = arith.constant 0 : i32
    return %arg0, %c0_i32, %arg1 : i32, i32, i32
  }
  func.func @transform_3(%arg0: i32, %arg1: i32) -> (i32, i32, i32) {
    %c0_i32 = arith.constant 0 : i32
    %c0_i32_0 = arith.constant 0 : i32
    return %arg0, %c0_i32, %arg1 : i32, i32, i32
  }
}

</mosaic_0001>

<llo_original>
// kernel: tpu_custom_call.1
$region0: #{tpu_custom_call.1}
  #allocation0 [shape = 'u32[]', space=smem, size = 0x4, offset = 0x4, fixed_abs, tag = 'smem constant byte address 0x4 - core index']
  #allocation1 [shape = 'u32[72,128]{1,0:T(1,128)}', space=vmem, size = 0x9000, scoped, tag = 'internal scratch']
  %s0 = inlined_call_operand.vmem [shape: f32[256,128], index: 0, kind: input, shape index: {}]
  %s1 = inlined_call_operand.vmem [shape: f32[256,1], index: 1, kind: input, shape index: {}]
  %s2 = inlined_call_operand.hbm [shape: f32[2,128,512], index: 2, kind: input, shape index: {}]
  %s3 = inlined_call_operand.hbm [shape: f32[2,256,512], index: 3, kind: output, shape index: {}]
  %s4 = sld [smem:[#allocation0]]
  $region49: #{tpu_custom_call.1} parent=0
    _
  %s6 = ssub.s32 1, %s4
  %s7 = scalar_select 0, %s6, %s4
  $region1: #{tpu_custom_call.1} parent=0
    #allocation2 [shape = 'u8[262144]{0}', space=vmem, size = 0x40000, scoped, tag = 'input window, operand 2']
    #allocation3 [shape = 's32[2]{0}', space=sflag, size = 0x8, scoped, tag = 'scoped memory for tpu_custom_call.1']
    #allocation4 [shape = 's32[2]{0}', space=sflag, size = 0x8, scoped, tag = 'scoped memory for tpu_custom_call.1']
    #allocation5 [shape = 'u8[524288]{0}', space=vmem, size = 0x80000, scoped, tag = 'output window, operand 0']
    %8 = vsyncpa [#allocation3], 0
    %s9 = scalar_lea.sflag [#allocation3], 1
    %10 = vsyncpa %s9, 0
    %11 = vsyncpa [#allocation4], 0
    %s12 = scalar_lea.sflag [#allocation4], 1
    %13 = vsyncpa %s12, 0
    loop: start=0, step=1, limit=6
    $region2: #{tpu_custom_call.1} parent=1 // loop_pre_header
      _
    $region3: #{tpu_custom_call.1} parent=1 // loop_header
      %s15 = sphi 0, %s19
      %p16 = scmp.ge.s32.totalorder %s15, 6
      %s22 = sphi 0, %s34
      %s23 = sphi 0, %s30
      %s24 = sphi 0, %s22
      %s25 = sphi 0, %s23
      %s26 = sphi 0, %s24
      %s27 = sphi 0, %s25
      %s35 = sphi 0, %s35
      %s37 = sphi 0, %s35
      %s38 = sphi 0, %s37
      %s52 = sphi 0, %s38
      %s56 = sphi 0, %s56
      %s58 = sphi 0, %s56
      %s59 = sphi 0, %s58
      %s73 = sphi 0, %s59
      %s81 = sphi 0, %s83
      %s84 = sphi 0, %s81
      %s85 = sphi 0, %s84
      %s101 = sphi 0, %s85
      %s109 = sphi 0, %s111
      %s112 = sphi 0, %s109
      %s113 = sphi 0, %s112
      %s129 = sphi 0, %s113
    $region4: #{tpu_custom_call.1} parent=1 // loop_header_branch
      %18 = sbr.rel (%p16) target = $region8
    $region5: #{tpu_custom_call.1} parent=1 // loop_body
      %s20 = ssub.s32 %s15, 1
      %s21 = ssub.s32 %s15, 2
      %s28 = sadd.s32 1, %s23
      %p29 = scmp.ge.s32.totalorder %s28, 2
      %s30 = scalar_select %p29, 0, %s28
      %s31 = sadd.s32 1, %s22
      %s32 = scalar_select %p29, %s31, %s22
      %p33 = scmp.ge.s32.totalorder %s32, 2
      %s34 = scalar_select %p33, 0, %s32
      %s36 = sadd.s32 %s35, 1
      %p39 = scmp.eq.s32.totalorder %s15, 3
      %p40 = scmp.ne.s32.totalorder %s35, %s37
      %p41 = scmp.eq.s32.totalorder %s15, 0
      %p42 = por %p40, %p41
      %p43 = scmp.ne.s32.totalorder %s35, %s37
      %p44 = scmp.eq.s32.totalorder %s20, 3
      %p45 = por %p43, %p44
      %p46 = scmp.ne.s32.totalorder %s37, %s38
      %p47 = scmp.eq.s32.totalorder %s20, 0
      %p48 = por %p46, %p47
      %p49 = scmp.ne.s32.totalorder %s37, %s38
      %p50 = scmp.eq.s32.totalorder %s21, 3
      %p51 = por %p49, %p50
      %p53 = scmp.ne.s32.totalorder %s38, %s52
      %p54 = scmp.eq.s32.totalorder %s21, 0
      %p55 = por %p53, %p54
      %s57 = sadd.s32 %s56, 1
      %p60 = scmp.eq.s32.totalorder %s15, 3
      %p61 = scmp.ne.s32.totalorder %s56, %s58
      %p62 = scmp.eq.s32.totalorder %s15, 0
      %p63 = por %p61, %p62
      %p64 = scmp.ne.s32.totalorder %s56, %s58
      %p65 = scmp.eq.s32.totalorder %s20, 3
      %p66 = por %p64, %p65
      %p67 = scmp.ne.s32.totalorder %s58, %s59
      %p68 = scmp.eq.s32.totalorder %s20, 0
      %p69 = por %p67, %p68
      %p70 = scmp.ne.s32.totalorder %s58, %s59
      %p71 = scmp.eq.s32.totalorder %s21, 3
      %p72 = por %p70, %p71
      %p74 = scmp.ne.s32.totalorder %s59, %s73
      %p75 = scmp.eq.s32.totalorder %s21, 0
      %p76 = por %p74, %p75
      %s77 = ssub.s32 %s22, %s34
      %s78 = ssub.s32 %s23, %s30
      %s79 = sor.u32 %s77, %s78
      %p80 = scmp.eq.s32.totalorder %s79, 0
      %s82 = sadd.s32 %s81, 1
      %s83 = scalar_select %p80, %s81, %s82
      %p86 = pneg %p80
      %p87 = scmp.eq.s32.totalorder %s15, 3
      %p88 = por %p86, %p87
      %p89 = scmp.ne.s32.totalorder %s81, %s84
      %p90 = scmp.eq.s32.totalorder %s15, 0
      %p91 = por %p89, %p90
      %p92 = scmp.ne.s32.totalorder %s81, %s84
      %p93 = scmp.eq.s32.totalorder %s20, 3
      %p94 = por %p92, %p93
      %p95 = scmp.ne.s32.totalorder %s84, %s85
      %p96 = scmp.eq.s32.totalorder %s20, 0
      %p97 = por %p95, %p96
      %p98 = scmp.ne.s32.totalorder %s84, %s85
      %p99 = scmp.eq.s32.totalorder %s21, 3
      %p100 = por %p98, %p99
      %p102 = scmp.ne.s32.totalorder %s85, %s101
      %p103 = scmp.eq.s32.totalorder %s21, 0
      %p104 = por %p102, %p103
      %s105 = ssub.s32 %s22, %s34
      %s106 = ssub.s32 %s23, %s30
      %s107 = sor.u32 %s105, %s106
      %p108 = scmp.eq.s32.totalorder %s107, 0
      %s110 = sadd.s32 %s109, 1
      %s111 = scalar_select %p108, %s109, %s110
      %p114 = pneg %p108
      %p115 = scmp.eq.s32.totalorder %s15, 3
      %p116 = por %p114, %p115
      %p117 = scmp.ne.s32.totalorder %s109, %s112
      %p118 = scmp.eq.s32.totalorder %s15, 0
      %p119 = por %p117, %p118
      %p120 = scmp.ne.s32.totalorder %s109, %s112
      %p121 = scmp.eq.s32.totalorder %s20, 3
      %p122 = por %p120, %p121
      %p123 = scmp.ne.s32.totalorder %s112, %s113
      %p124 = scmp.eq.s32.totalorder %s20, 0
      %p125 = por %p123, %p124
      %p126 = scmp.ne.s32.totalorder %s112, %s113
      %p127 = scmp.eq.s32.totalorder %s21, 3
      %p128 = por %p126, %p127
      %p130 = scmp.ne.s32.totalorder %s113, %s129
      %p131 = scmp.eq.s32.totalorder %s21, 0
      %p132 = por %p130, %p131
      %p133 = scmp.le.s32.totalorder 1, %s15
      %p134 = scmp.lt.s32.totalorder %s15, 5
      %p135 = pnand %p133, %p134
      %p136 = pneg %p135
      // Predicated region
      $region9: #{tpu_custom_call.1} parent=5 // pred_check
        _
      $region10: #{tpu_custom_call.1} parent=5 // pred_check_branch
        %138 = sbr.rel (%p135) target = $region12
      $region11: #{tpu_custom_call.1} parent=5 // pred_region
        %s139 = ssub.s32 %s15, 1
        // Predicated region
        $region13: #{tpu_custom_call.1} parent=11 // pred_check
          %p140 = pneg %p48
        $region14: #{tpu_custom_call.1} parent=11 // pred_check_branch
          %142 = sbr.rel (%p140) target = $region16
        $region15: #{tpu_custom_call.1} parent=11 // pred_region
          _
        $region16: #{tpu_custom_call.1} parent=11 // pred_fallthru
          _
        // Predicated region
        $region17: #{tpu_custom_call.1} parent=11 // pred_check
          %p143 = pneg %p69
        $region18: #{tpu_custom_call.1} parent=11 // pred_check_branch
          %145 = sbr.rel (%p143) target = $region20
        $region19: #{tpu_custom_call.1} parent=11 // pred_region
          _
        $region20: #{tpu_custom_call.1} parent=11 // pred_fallthru
          _
      $region12: #{tpu_custom_call.1} parent=5 // pred_fallthru
        _
      %p146 = scmp.lt.s32.totalorder %s15, 4
      // Predicated region
      $region21: #{tpu_custom_call.1} parent=5 // pred_check
        %p147 = pneg %p146
      $region22: #{tpu_custom_call.1} parent=5 // pred_check_branch
        %149 = sbr.rel (%p147) target = $region24
      $region23: #{tpu_custom_call.1} parent=5 // pred_region
        // Predicated region
        $region25: #{tpu_custom_call.1} parent=23 // pred_check
          %p150 = pneg %p91
        $region26: #{tpu_custom_call.1} parent=23 // pred_check_branch
          %152 = sbr.rel (%p150) target = $region28
        $region27: #{tpu_custom_call.1} parent=23 // pred_region
          %s153 = sand.u32 %s81, 1
          %s154 = scalar_lea.sflag [#allocation3], %s153
          %s155 = sand.u32 %s81, 1
          %s156 = smul.addr %s155, 256
          %s157 = scalar_lea.vmem [#allocation2], %s156
          %s158 = smul.u32 2, %s23
          %160 = vsyncadd %s154, 0
          %s161 = smul.addr %s22, 64
          %s162 = sadd.s32 %s158, %s161
          %s163 = smul.addr %s162, 8
          %s164 = scalar_lea.hbm %s2, %s163
          %s165 = sshll.u32 %s164, 4
          %s166 = int_to_ptr.hbm [resolvable:$true] %s165
          %s167 = sshll.u32 %s157, 4
          %s168 = int_to_ptr.vmem [resolvable:$true] %s167
          %173 = dma.hbm_to_vmem [thread:$0]  %s166, 4096, %s168, %s154, 512, 256, 16
        $region28: #{tpu_custom_call.1} parent=23 // pred_fallthru
          _
      $region24: #{tpu_custom_call.1} parent=5 // pred_fallthru
        _
      %p174 = scmp.le.s32.totalorder 1, %s15
      %p175 = scmp.lt.s32.totalorder %s15, 5
      %p176 = pnand %p174, %p175
      %p177 = pneg %p176
      // Predicated region
      $region29: #{tpu_custom_call.1} parent=5 // pred_check
        _
      $region30: #{tpu_custom_call.1} parent=5 // pred_check_branch
        %179 = sbr.rel (%p176) target = $region32
      $region31: #{tpu_custom_call.1} parent=5 // pred_region
        %s180 = ssub.s32 %s15, 1
        %s181 = sand.u32 %s84, 1
        %s182 = scalar_lea.sflag [#allocation3], %s181
        %s183 = sand.u32 %s84, 1
        %s184 = smul.addr %s183, 256
        %s185 = scalar_lea.vmem [#allocation2], %s184
        // Predicated region
        $region33: #{tpu_custom_call.1} parent=31 // pred_check
          %p186 = pneg %p97
        $region34: #{tpu_custom_call.1} parent=31 // pred_check_branch
          %188 = sbr.rel (%p186) target = $region36
        $region35: #{tpu_custom_call.1} parent=31 // pred_region
          %190 = dma.done %s182, 4096
        $region36: #{tpu_custom_call.1} parent=31 // pred_fallthru
          _
        %p191 = pneg %p48
        %p192 = pneg %p45
        %p193 = pneg %p69
        %p194 = pneg %p66
        %s195 = sand.u32 %s84, 1
        %s196 = scalar_lea.sflag [#allocation3], %s195
        %s197 = sand.u32 %s84, 1
        %s198 = smul.addr %s197, 256
        %s199 = scalar_lea.vmem [#allocation2], %s198
        %p200 = pneg %p97
        %p201 = pneg %p94
        %p202 = pneg %p125
        %p203 = pneg %p122
        %s204 = sand.u32 %s112, 1
        %s205 = scalar_lea.sflag [#allocation4], %s204
        %s206 = sand.u32 %s112, 1
        %s207 = smul.addr %s206, 512
        %s208 = scalar_lea.vmem [#allocation5], %s207
        %s209 = smul.u32 2, %s25
        %s210 = smul.u32 2, %s25
        %v211 = vld [vmem:[%s0] sm:$0xff]
        %v212 = vld [vmem:[%s0 + $0x8] sm:$0xff]
        %v213 = vld [vmem:[%s0 + $0x10] sm:$0xff]
        %v214 = vld [vmem:[%s0 + $0x18] sm:$0xff]
        %v215 = vld [vmem:[%s0 + $0x20] sm:$0xff]
        %v216 = vld [vmem:[%s0 + $0x28] sm:$0xff]
        %v217 = vld [vmem:[%s0 + $0x30] sm:$0xff]
        %v218 = vld [vmem:[%s0 + $0x38] sm:$0xff]
        %v219 = vld [vmem:[%s0 + $0x40] sm:$0xff]
        %v220 = vld [vmem:[%s0 + $0x48] sm:$0xff]
        %v221 = vld [vmem:[%s0 + $0x50] sm:$0xff]
        %v222 = vld [vmem:[%s0 + $0x58] sm:$0xff]
        %v223 = vld [vmem:[%s0 + $0x60] sm:$0xff]
        %v224 = vld [vmem:[%s0 + $0x68] sm:$0xff]
        %v225 = vld [vmem:[%s0 + $0x70] sm:$0xff]
        %v226 = vld [vmem:[%s0 + $0x78] sm:$0xff]
        %v227 = vld [vmem:[%s0 + $0x80] sm:$0xff]
        %v228 = vld [vmem:[%s0 + $0x88] sm:$0xff]
        %v229 = vld [vmem:[%s0 + $0x90] sm:$0xff]
        %v230 = vld [vmem:[%s0 + $0x98] sm:$0xff]
        %v231 = vld [vmem:[%s0 + $0xa0] sm:$0xff]
        %v232 = vld [vmem:[%s0 + $0xa8] sm:$0xff]
        %v233 = vld [vmem:[%s0 + $0xb0] sm:$0xff]
        %v234 = vld [vmem:[%s0 + $0xb8] sm:$0xff]
        %v235 = vld [vmem:[%s0 + $0xc0] sm:$0xff]
        %v236 = vld [vmem:[%s0 + $0xc8] sm:$0xff]
        %v237 = vld [vmem:[%s0 + $0xd0] sm:$0xff]
        %v238 = vld [vmem:[%s0 + $0xd8] sm:$0xff]
        %v239 = vld [vmem:[%s0 + $0xe0] sm:$0xff]
        %v240 = vld [vmem:[%s0 + $0xe8] sm:$0xff]
        %v241 = vld [vmem:[%s0 + $0xf0] sm:$0xff]
        %v242 = vld [vmem:[%s0 + $0xf8] sm:$0xff]
        %v243 = vld [vmem:[%s185] sm:$0xff]
        %v244 = vld [vmem:[%s185 + $0x8] sm:$0xff]
        %v245 = vld [vmem:[%s185 + $0x10] sm:$0xff]
        %v246 = vld [vmem:[%s185 + $0x18] sm:$0xff]
        %v247 = vld [vmem:[%s185 + $0x20] sm:$0xff]
        %v248 = vld [vmem:[%s185 + $0x28] sm:$0xff]
        %v249 = vld [vmem:[%s185 + $0x30] sm:$0xff]
        %v250 = vld [vmem:[%s185 + $0x38] sm:$0xff]
        %v251 = vld [vmem:[%s185 + $0x40] sm:$0xff]
        %v252 = vld [vmem:[%s185 + $0x48] sm:$0xff]
        %v253 = vld [vmem:[%s185 + $0x50] sm:$0xff]
        %v254 = vld [vmem:[%s185 + $0x58] sm:$0xff]
        %v255 = vld [vmem:[%s185 + $0x60] sm:$0xff]
        %v256 = vld [vmem:[%s185 + $0x68] sm:$0xff]
        %v257 = vld [vmem:[%s185 + $0x70] sm:$0xff]
        %v258 = vld [vmem:[%s185 + $0x78] sm:$0xff]
        %v259 = vld [vmem:[%s185 + $0x80] sm:$0xff]
        %v260 = vld [vmem:[%s185 + $0x88] sm:$0xff]
        %v261 = vld [vmem:[%s185 + $0x90] sm:$0xff]
        %v262 = vld [vmem:[%s185 + $0x98] sm:$0xff]
        %v263 = vld [vmem:[%s185 + $0xa0] sm:$0xff]
        %v264 = vld [vmem:[%s185 + $0xa8] sm:$0xff]
        %v265 = vld [vmem:[%s185 + $0xb0] sm:$0xff]
        %v266 = vld [vmem:[%s185 + $0xb8] sm:$0xff]
        %v267 = vld [vmem:[%s185 + $0xc0] sm:$0xff]
        %v268 = vld [vmem:[%s185 + $0xc8] sm:$0xff]
        %v269 = vld [vmem:[%s185 + $0xd0] sm:$0xff]
        %v270 = vld [vmem:[%s185 + $0xd8] sm:$0xff]
        %v271 = vld [vmem:[%s185 + $0xe0] sm:$0xff]
        %v272 = vld [vmem:[%s185 + $0xe8] sm:$0xff]
        %v273 = vld [vmem:[%s185 + $0xf0] sm:$0xff]
        %v274 = vld [vmem:[%s185 + $0xf8] sm:$0xff]
        %v275 = vld [vmem:[%s1] sm:$0xff]
        %v276 = vld [vmem:[%s1 + $0x8] sm:$0xff]
        %v277 = vld [vmem:[%s1 + $0x10] sm:$0xff]
        %v278 = vld [vmem:[%s1 + $0x18] sm:$0xff]
        %v279 = vld [vmem:[%s1 + $0x20] sm:$0xff]
        %v280 = vld [vmem:[%s1 + $0x28] sm:$0xff]
        %v281 = vld [vmem:[%s1 + $0x30] sm:$0xff]
        %v282 = vld [vmem:[%s1 + $0x38] sm:$0xff]
        %v283 = vld [vmem:[%s1 + $0x40] sm:$0xff]
        %v284 = vld [vmem:[%s1 + $0x48] sm:$0xff]
        %v285 = vld [vmem:[%s1 + $0x50] sm:$0xff]
        %v286 = vld [vmem:[%s1 + $0x58] sm:$0xff]
        %v287 = vld [vmem:[%s1 + $0x60] sm:$0xff]
        %v288 = vld [vmem:[%s1 + $0x68] sm:$0xff]
        %v289 = vld [vmem:[%s1 + $0x70] sm:$0xff]
        %v290 = vld [vmem:[%s1 + $0x78] sm:$0xff]
        %v291 = vld [vmem:[%s1 + $0x80] sm:$0xff]
        %v292 = vld [vmem:[%s1 + $0x88] sm:$0xff]
        %v293 = vld [vmem:[%s1 + $0x90] sm:$0xff]
        %v294 = vld [vmem:[%s1 + $0x98] sm:$0xff]
        %v295 = vld [vmem:[%s1 + $0xa0] sm:$0xff]
        %v296 = vld [vmem:[%s1 + $0xa8] sm:$0xff]
        %v297 = vld [vmem:[%s1 + $0xb0] sm:$0xff]
        %v298 = vld [vmem:[%s1 + $0xb8] sm:$0xff]
        %v299 = vld [vmem:[%s1 + $0xc0] sm:$0xff]
        %v300 = vld [vmem:[%s1 + $0xc8] sm:$0xff]
        %v301 = vld [vmem:[%s1 + $0xd0] sm:$0xff]
        %v302 = vld [vmem:[%s1 + $0xd8] sm:$0xff]
        %v303 = vld [vmem:[%s1 + $0xe0] sm:$0xff]
        %v304 = vld [vmem:[%s1 + $0xe8] sm:$0xff]
        %v305 = vld [vmem:[%s1 + $0xf0] sm:$0xff]
        %v306 = vld [vmem:[%s1 + $0xf8] sm:$0xff]
        %308 = vset.pattern.permute.xlu0 0
        %309 = vperm.xlu0 %308, %v275
        %v310 = vpop.permute.xlu0 %309
        %313 = vset.pattern.permute.xlu0 0
        %314 = vperm.xlu0 %313, %v276
        %v315 = vpop.permute.xlu0 %314
        %318 = vset.pattern.permute.xlu0 0
        %319 = vperm.xlu0 %318, %v277
        %v320 = vpop.permute.xlu0 %319
        %323 = vset.pattern.permute.xlu0 0
        %324 = vperm.xlu0 %323, %v278
        %v325 = vpop.permute.xlu0 %324
        %328 = vset.pattern.permute.xlu0 0
        %329 = vperm.xlu0 %328, %v279
        %v330 = vpop.permute.xlu0 %329
        %333 = vset.pattern.permute.xlu0 0
        %334 = vperm.xlu0 %333, %v280
        %v335 = vpop.permute.xlu0 %334
        %338 = vset.pattern.permute.xlu0 0
        %339 = vperm.xlu0 %338, %v281
        %v340 = vpop.permute.xlu0 %339
        %343 = vset.pattern.permute.xlu0 0
        %344 = vperm.xlu0 %343, %v282
        %v345 = vpop.permute.xlu0 %344
        %348 = vset.pattern.permute.xlu0 0
        %349 = vperm.xlu0 %348, %v283
        %v350 = vpop.permute.xlu0 %349
        %353 = vset.pattern.permute.xlu0 0
        %354 = vperm.xlu0 %353, %v284
        %v355 = vpop.permute.xlu0 %354
        %358 = vset.pattern.permute.xlu0 0
        %359 = vperm.xlu0 %358, %v285
        %v360 = vpop.permute.xlu0 %359
        %363 = vset.pattern.permute.xlu0 0
        %364 = vperm.xlu0 %363, %v286
        %v365 = vpop.permute.xlu0 %364
        %368 = vset.pattern.permute.xlu0 0
        %369 = vperm.xlu0 %368, %v287
        %v370 = vpop.permute.xlu0 %369
        %373 = vset.pattern.permute.xlu0 0
        %374 = vperm.xlu0 %373, %v288
        %v375 = vpop.permute.xlu0 %374
        %378 = vset.pattern.permute.xlu0 0
        %379 = vperm.xlu0 %378, %v289
        %v380 = vpop.permute.xlu0 %379
        %383 = vset.pattern.permute.xlu0 0
        %384 = vperm.xlu0 %383, %v290
        %v385 = vpop.permute.xlu0 %384
        %388 = vset.pattern.permute.xlu0 0
        %389 = vperm.xlu0 %388, %v291
        %v390 = vpop.permute.xlu0 %389
        %393 = vset.pattern.permute.xlu0 0
        %394 = vperm.xlu0 %393, %v292
        %v395 = vpop.permute.xlu0 %394
        %398 = vset.pattern.permute.xlu0 0
        %399 = vperm.xlu0 %398, %v293
        %v400 = vpop.permute.xlu0 %399
        %403 = vset.pattern.permute.xlu0 0
        %404 = vperm.xlu0 %403, %v294
        %v405 = vpop.permute.xlu0 %404
        %408 = vset.pattern.permute.xlu0 0
        %409 = vperm.xlu0 %408, %v295
        %v410 = vpop.permute.xlu0 %409
        %413 = vset.pattern.permute.xlu0 0
        %414 = vperm.xlu0 %413, %v296
        %v415 = vpop.permute.xlu0 %414
        %418 = vset.pattern.permute.xlu0 0
        %419 = vperm.xlu0 %418, %v297
        %v420 = vpop.permute.xlu0 %419
        %423 = vset.pattern.permute.xlu0 0
        %424 = vperm.xlu0 %423, %v298
        %v425 = vpop.permute.xlu0 %424
        %428 = vset.pattern.permute.xlu0 0
        %429 = vperm.xlu0 %428, %v299
        %v430 = vpop.permute.xlu0 %429
        %433 = vset.pattern.permute.xlu0 0
        %434 = vperm.xlu0 %433, %v300
        %v435 = vpop.permute.xlu0 %434
        %438 = vset.pattern.permute.xlu0 0
        %439 = vperm.xlu0 %438, %v301
        %v440 = vpop.permute.xlu0 %439
        %443 = vset.pattern.permute.xlu0 0
        %444 = vperm.xlu0 %443, %v302
        %v445 = vpop.permute.xlu0 %444
        %448 = vset.pattern.permute.xlu0 0
        %449 = vperm.xlu0 %448, %v303
        %v450 = vpop.permute.xlu0 %449
        %453 = vset.pattern.permute.xlu0 0
        %454 = vperm.xlu0 %453, %v304
        %v455 = vpop.permute.xlu0 %454
        %458 = vset.pattern.permute.xlu0 0
        %459 = vperm.xlu0 %458, %v305
        %v460 = vpop.permute.xlu0 %459
        %463 = vset.pattern.permute.xlu0 0
        %464 = vperm.xlu0 %463, %v306
        %v465 = vpop.permute.xlu0 %464
        %467 = vmatpush.msra.mxu0 %v273
        %468 = vmatpush.msra.mxu0 %v271
        %469 = vmatpush.msra.mxu0 %v269
        %470 = vmatpush.msra.mxu0 %v267
        %471 = vmatpush.msra.mxu0 %v265
        %472 = vmatpush.msra.mxu0 %v263
        %473 = vmatpush.msra.mxu0 %v261
        %474 = vmatpush.msra.mxu0 %v259
        %475 = vmatpush.msra.mxu0 %v257
        %476 = vmatpush.msra.mxu0 %v255
        %477 = vmatpush.msra.mxu0 %v253
        %478 = vmatpush.msra.mxu0 %v251
        %479 = vmatpush.msra.mxu0 %v249
        %480 = vmatpush.msra.mxu0 %v247
        %481 = vmatpush.msra.mxu0 %v245
        %482 = vmatpush.msra.mxu0 %v243
        %483 = vmatmul.f32.gmra.mxu0 %v211
        %v484 = vpop.f32.mrf.mxu0
        %v485 = vadd.f32 %v310, %v484
        %486 = vmatmul.f32.gmra.mxu0 %v212
        %v487 = vpop.f32.mrf.mxu0
        %v488 = vadd.f32 %v315, %v487
        %489 = vmatmul.f32.gmra.mxu0 %v213
        %v490 = vpop.f32.mrf.mxu0
        %v491 = vadd.f32 %v320, %v490
        %492 = vmatmul.f32.gmra.mxu0 %v214
        %v493 = vpop.f32.mrf.mxu0
        %v494 = vadd.f32 %v325, %v493
        %495 = vmatmul.f32.gmra.mxu0 %v215
        %v496 = vpop.f32.mrf.mxu0
        %v497 = vadd.f32 %v330, %v496
        %498 = vmatmul.f32.gmra.mxu0 %v216
        %v499 = vpop.f32.mrf.mxu0
        %v500 = vadd.f32 %v335, %v499
        %501 = vmatmul.f32.gmra.mxu0 %v217
        %v502 = vpop.f32.mrf.mxu0
        %v503 = vadd.f32 %v340, %v502
        %504 = vmatmul.f32.gmra.mxu0 %v218
        %v505 = vpop.f32.mrf.mxu0
        %v506 = vadd.f32 %v345, %v505
        %507 = vmatmul.f32.gmra.mxu0 %v219
        %v508 = vpop.f32.mrf.mxu0
        %v509 = vadd.f32 %v350, %v508
        %510 = vmatmul.f32.gmra.mxu0 %v220
        %v511 = vpop.f32.mrf.mxu0
        %v512 = vadd.f32 %v355, %v511
        %513 = vmatmul.f32.gmra.mxu0 %v221
        %v514 = vpop.f32.mrf.mxu0
        %v515 = vadd.f32 %v360, %v514
        %516 = vmatmul.f32.gmra.mxu0 %v222
        %v517 = vpop.f32.mrf.mxu0
        %v518 = vadd.f32 %v365, %v517
        %519 = vmatmul.f32.gmra.mxu0 %v223
        %v520 = vpop.f32.mrf.mxu0
        %v521 = vadd.f32 %v370, %v520
        %522 = vmatmul.f32.gmra.mxu0 %v224
        %v523 = vpop.f32.mrf.mxu0
        %v524 = vadd.f32 %v375, %v523
        %525 = vmatmul.f32.gmra.mxu0 %v225
        %v526 = vpop.f32.mrf.mxu0
        %v527 = vadd.f32 %v380, %v526
        %528 = vmatmul.f32.gmra.mxu0 %v226
        %v529 = vpop.f32.mrf.mxu0
        %v530 = vadd.f32 %v385, %v529
        %531 = vmatmul.f32.gmra.mxu0 %v227
        %v532 = vpop.f32.mrf.mxu0
        %v533 = vadd.f32 %v390, %v532
        %534 = vmatmul.f32.gmra.mxu0 %v228
        %v535 = vpop.f32.mrf.mxu0
        %v536 = vadd.f32 %v395, %v535
        %537 = vmatmul.f32.gmra.mxu0 %v229
        %v538 = vpop.f32.mrf.mxu0
        %v539 = vadd.f32 %v400, %v538
        %540 = vmatmul.f32.gmra.mxu0 %v230
        %v541 = vpop.f32.mrf.mxu0
        %v542 = vadd.f32 %v405, %v541
        %543 = vmatmul.f32.gmra.mxu0 %v231
        %v544 = vpop.f32.mrf.mxu0
        %v545 = vadd.f32 %v410, %v544
        %546 = vmatmul.f32.gmra.mxu0 %v232
        %v547 = vpop.f32.mrf.mxu0
        %v548 = vadd.f32 %v415, %v547
        %549 = vmatmul.f32.gmra.mxu0 %v233
        %v550 = vpop.f32.mrf.mxu0
        %v551 = vadd.f32 %v420, %v550
        %552 = vmatmul.f32.gmra.mxu0 %v234
        %v553 = vpop.f32.mrf.mxu0
        %v554 = vadd.f32 %v425, %v553
        %555 = vmatmul.f32.gmra.mxu0 %v235
        %v556 = vpop.f32.mrf.mxu0
        %v557 = vadd.f32 %v430, %v556
        %558 = vmatmul.f32.gmra.mxu0 %v236
        %v559 = vpop.f32.mrf.mxu0
        %v560 = vadd.f32 %v435, %v559
        %561 = vmatmul.f32.gmra.mxu0 %v237
        %v562 = vpop.f32.mrf.mxu0
        %v563 = vadd.f32 %v440, %v562
        %564 = vmatmul.f32.gmra.mxu0 %v238
        %v565 = vpop.f32.mrf.mxu0
        %v566 = vadd.f32 %v445, %v565
        %567 = vmatmul.f32.gmra.mxu0 %v239
        %v568 = vpop.f32.mrf.mxu0
        %v569 = vadd.f32 %v450, %v568
        %570 = vmatmul.f32.gmra.mxu0 %v240
        %v571 = vpop.f32.mrf.mxu0
        %v572 = vadd.f32 %v455, %v571
        %573 = vmatmul.f32.gmra.mxu0 %v241
        %v574 = vpop.f32.mrf.mxu0
        %v575 = vadd.f32 %v460, %v574
        %576 = vmatmul.f32.gmra.mxu0 %v242
        %v577 = vpop.f32.mrf.mxu0
        %v578 = vadd.f32 %v465, %v577
        %579 = vdwg.mxu0
        %580 = vmatpush.msra.mxu0 %v274
        %581 = vmatpush.msra.mxu0 %v272
        %582 = vmatpush.msra.mxu0 %v270
        %583 = vmatpush.msra.mxu0 %v268
        %584 = vmatpush.msra.mxu0 %v266
        %585 = vmatpush.msra.mxu0 %v264
        %586 = vmatpush.msra.mxu0 %v262
        %587 = vmatpush.msra.mxu0 %v260
        %588 = vmatpush.msra.mxu0 %v258
        %589 = vmatpush.msra.mxu0 %v256
        %590 = vmatpush.msra.mxu0 %v254
        %591 = vmatpush.msra.mxu0 %v252
        %592 = vmatpush.msra.mxu0 %v250
        %593 = vmatpush.msra.mxu0 %v248
        %594 = vmatpush.msra.mxu0 %v246
        %595 = vmatpush.msra.mxu0 %v244
        %596 = vmatmul.f32.gmra.mxu0 %v211
        %v597 = vpop.f32.mrf.mxu0
        %v598 = vadd.f32 %v310, %v597
        %599 = vmatmul.f32.gmra.mxu0 %v212
        %v600 = vpop.f32.mrf.mxu0
        %v601 = vadd.f32 %v315, %v600
        %602 = vmatmul.f32.gmra.mxu0 %v213
        %v603 = vpop.f32.mrf.mxu0
        %v604 = vadd.f32 %v320, %v603
        %605 = vmatmul.f32.gmra.mxu0 %v214
        %v606 = vpop.f32.mrf.mxu0
        %v607 = vadd.f32 %v325, %v606
        %608 = vmatmul.f32.gmra.mxu0 %v215
        %v609 = vpop.f32.mrf.mxu0
        %v610 = vadd.f32 %v330, %v609
        %611 = vmatmul.f32.gmra.mxu0 %v216
        %v612 = vpop.f32.mrf.mxu0
        %v613 = vadd.f32 %v335, %v612
        %614 = vmatmul.f32.gmra.mxu0 %v217
        %v615 = vpop.f32.mrf.mxu0
        %v616 = vadd.f32 %v340, %v615
        %617 = vmatmul.f32.gmra.mxu0 %v218
        %v618 = vpop.f32.mrf.mxu0
        %v619 = vadd.f32 %v345, %v618
        %620 = vmatmul.f32.gmra.mxu0 %v219
        %v621 = vpop.f32.mrf.mxu0
        %v622 = vadd.f32 %v350, %v621
        %623 = vmatmul.f32.gmra.mxu0 %v220
        %v624 = vpop.f32.mrf.mxu0
        %v625 = vadd.f32 %v355, %v624
        %626 = vmatmul.f32.gmra.mxu0 %v221
        %v627 = vpop.f32.mrf.mxu0
        %v628 = vadd.f32 %v360, %v627
        %629 = vmatmul.f32.gmra.mxu0 %v222
        %v630 = vpop.f32.mrf.mxu0
        %v631 = vadd.f32 %v365, %v630
        %632 = vmatmul.f32.gmra.mxu0 %v223
        %v633 = vpop.f32.mrf.mxu0
        %v634 = vadd.f32 %v370, %v633
        %635 = vmatmul.f32.gmra.mxu0 %v224
        %v636 = vpop.f32.mrf.mxu0
        %v637 = vadd.f32 %v375, %v636
        %638 = vmatmul.f32.gmra.mxu0 %v225
        %v639 = vpop.f32.mrf.mxu0
        %v640 = vadd.f32 %v380, %v639
        %641 = vmatmul.f32.gmra.mxu0 %v226
        %v642 = vpop.f32.mrf.mxu0
        %v643 = vadd.f32 %v385, %v642
        %644 = vmatmul.f32.gmra.mxu0 %v227
        %v645 = vpop.f32.mrf.mxu0
        %v646 = vadd.f32 %v390, %v645
        %647 = vmatmul.f32.gmra.mxu0 %v228
        %v648 = vpop.f32.mrf.mxu0
        %v649 = vadd.f32 %v395, %v648
        %650 = vmatmul.f32.gmra.mxu0 %v229
        %v651 = vpop.f32.mrf.mxu0
        %v652 = vadd.f32 %v400, %v651
        %653 = vmatmul.f32.gmra.mxu0 %v230
        %v654 = vpop.f32.mrf.mxu0
        %v655 = vadd.f32 %v405, %v654
        %656 = vmatmul.f32.gmra.mxu0 %v231
        %v657 = vpop.f32.mrf.mxu0
        %v658 = vadd.f32 %v410, %v657
        %659 = vmatmul.f32.gmra.mxu0 %v232
        %v660 = vpop.f32.mrf.mxu0
        %v661 = vadd.f32 %v415, %v660
        %662 = vmatmul.f32.gmra.mxu0 %v233
        %v663 = vpop.f32.mrf.mxu0
        %v664 = vadd.f32 %v420, %v663
        %665 = vmatmul.f32.gmra.mxu0 %v234
        %v666 = vpop.f32.mrf.mxu0
        %v667 = vadd.f32 %v425, %v666
        %668 = vmatmul.f32.gmra.mxu0 %v235
        %v669 = vpop.f32.mrf.mxu0
        %v670 = vadd.f32 %v430, %v669
        %671 = vmatmul.f32.gmra.mxu0 %v236
        %v672 = vpop.f32.mrf.mxu0
        %v673 = vadd.f32 %v435, %v672
        %674 = vmatmul.f32.gmra.mxu0 %v237
        %v675 = vpop.f32.mrf.mxu0
        %v676 = vadd.f32 %v440, %v675
        %677 = vmatmul.f32.gmra.mxu0 %v238
        %v678 = vpop.f32.mrf.mxu0
        %v679 = vadd.f32 %v445, %v678
        %680 = vmatmul.f32.gmra.mxu0 %v239
        %v681 = vpop.f32.mrf.mxu0
        %v682 = vadd.f32 %v450, %v681
        %683 = vmatmul.f32.gmra.mxu0 %v240
        %v684 = vpop.f32.mrf.mxu0
        %v685 = vadd.f32 %v455, %v684
        %686 = vmatmul.f32.gmra.mxu0 %v241
        %v687 = vpop.f32.mrf.mxu0
        %v688 = vadd.f32 %v460, %v687
        %689 = vmatmul.f32.gmra.mxu0 %v242
        %v690 = vpop.f32.mrf.mxu0
        %v691 = vadd.f32 %v465, %v690
        %692 = vdwg.mxu0
        %693 = vst [vmem:[%s208] sm:$0xff] %v485
        %694 = vst [vmem:[%s208 + $0x8] sm:$0xff] %v598
        %695 = vst [vmem:[%s208 + $0x10] sm:$0xff] %v488
        %696 = vst [vmem:[%s208 + $0x18] sm:$0xff] %v601
        %697 = vst [vmem:[%s208 + $0x20] sm:$0xff] %v491
        %698 = vst [vmem:[%s208 + $0x28] sm:$0xff] %v604
        %699 = vst [vmem:[%s208 + $0x30] sm:$0xff] %v494
        %700 = vst [vmem:[%s208 + $0x38] sm:$0xff] %v607
        %701 = vst [vmem:[%s208 + $0x40] sm:$0xff] %v497
        %702 = vst [vmem:[%s208 + $0x48] sm:$0xff] %v610
        %703 = vst [vmem:[%s208 + $0x50] sm:$0xff] %v500
        %704 = vst [vmem:[%s208 + $0x58] sm:$0xff] %v613
        %705 = vst [vmem:[%s208 + $0x60] sm:$0xff] %v503
        %706 = vst [vmem:[%s208 + $0x68] sm:$0xff] %v616
        %707 = vst [vmem:[%s208 + $0x70] sm:$0xff] %v506
        %708 = vst [vmem:[%s208 + $0x78] sm:$0xff] %v619
        %709 = vst [vmem:[%s208 + $0x80] sm:$0xff] %v509
        %710 = vst [vmem:[%s208 + $0x88] sm:$0xff] %v622
        %711 = vst [vmem:[%s208 + $0x90] sm:$0xff] %v512
        %712 = vst [vmem:[%s208 + $0x98] sm:$0xff] %v625
        %713 = vst [vmem:[%s208 + $0xa0] sm:$0xff] %v515
        %714 = vst [vmem:[%s208 + $0xa8] sm:$0xff] %v628
        %715 = vst [vmem:[%s208 + $0xb0] sm:$0xff] %v518
        %716 = vst [vmem:[%s208 + $0xb8] sm:$0xff] %v631
        %717 = vst [vmem:[%s208 + $0xc0] sm:$0xff] %v521
        %718 = vst [vmem:[%s208 + $0xc8] sm:$0xff] %v634
        %719 = vst [vmem:[%s208 + $0xd0] sm:$0xff] %v524
        %720 = vst [vmem:[%s208 + $0xd8] sm:$0xff] %v637
        %721 = vst [vmem:[%s208 + $0xe0] sm:$0xff] %v527
        %722 = vst [vmem:[%s208 + $0xe8] sm:$0xff] %v640
        %723 = vst [vmem:[%s208 + $0xf0] sm:$0xff] %v530
        %724 = vst [vmem:[%s208 + $0xf8] sm:$0xff] %v643
        %725 = vst [vmem:[%s208 + $0x100] sm:$0xff] %v533
        %726 = vst [vmem:[%s208 + $0x108] sm:$0xff] %v646
        %727 = vst [vmem:[%s208 + $0x110] sm:$0xff] %v536
        %728 = vst [vmem:[%s208 + $0x118] sm:$0xff] %v649
        %729 = vst [vmem:[%s208 + $0x120] sm:$0xff] %v539
        %730 = vst [vmem:[%s208 + $0x128] sm:$0xff] %v652
        %731 = vst [vmem:[%s208 + $0x130] sm:$0xff] %v542
        %732 = vst [vmem:[%s208 + $0x138] sm:$0xff] %v655
        %733 = vst [vmem:[%s208 + $0x140] sm:$0xff] %v545
        %734 = vst [vmem:[%s208 + $0x148] sm:$0xff] %v658
        %735 = vst [vmem:[%s208 + $0x150] sm:$0xff] %v548
        %736 = vst [vmem:[%s208 + $0x158] sm:$0xff] %v661
        %737 = vst [vmem:[%s208 + $0x160] sm:$0xff] %v551
        %738 = vst [vmem:[%s208 + $0x168] sm:$0xff] %v664
        %739 = vst [vmem:[%s208 + $0x170] sm:$0xff] %v554
        %740 = vst [vmem:[%s208 + $0x178] sm:$0xff] %v667
        %741 = vst [vmem:[%s208 + $0x180] sm:$0xff] %v557
        %742 = vst [vmem:[%s208 + $0x188] sm:$0xff] %v670
        %743 = vst [vmem:[%s208 + $0x190] sm:$0xff] %v560
        %744 = vst [vmem:[%s208 + $0x198] sm:$0xff] %v673
        %745 = vst [vmem:[%s208 + $0x1a0] sm:$0xff] %v563
        %746 = vst [vmem:[%s208 + $0x1a8] sm:$0xff] %v676
        %747 = vst [vmem:[%s208 + $0x1b0] sm:$0xff] %v566
        %748 = vst [vmem:[%s208 + $0x1b8] sm:$0xff] %v679
        %749 = vst [vmem:[%s208 + $0x1c0] sm:$0xff] %v569
        %750 = vst [vmem:[%s208 + $0x1c8] sm:$0xff] %v682
        %751 = vst [vmem:[%s208 + $0x1d0] sm:$0xff] %v572
        %752 = vst [vmem:[%s208 + $0x1d8] sm:$0xff] %v685
        %753 = vst [vmem:[%s208 + $0x1e0] sm:$0xff] %v575
        %754 = vst [vmem:[%s208 + $0x1e8] sm:$0xff] %v688
        %755 = vst [vmem:[%s208 + $0x1f0] sm:$0xff] %v578
        %756 = vst [vmem:[%s208 + $0x1f8] sm:$0xff] %v691
        %s757 = sand.u32 %s112, 1
        %s758 = scalar_lea.sflag [#allocation4], %s757
        %s759 = sand.u32 %s112, 1
        %s760 = smul.addr %s759, 512
        %s761 = scalar_lea.vmem [#allocation5], %s760
        // Predicated region
        $region37: #{tpu_custom_call.1} parent=31 // pred_check
          %p762 = pneg %p122
        $region38: #{tpu_custom_call.1} parent=31 // pred_check_branch
          %764 = sbr.rel (%p762) target = $region40
        $region39: #{tpu_custom_call.1} parent=31 // pred_region
          %s765 = smul.u32 2, %s25
          %767 = vsyncadd %s758, 0
          %s768 = smul.addr %s24, 128
          %s769 = sadd.s32 %s765, %s768
          %s770 = smul.addr %s769, 8
          %s771 = scalar_lea.hbm %s3, %s770
          %s772 = sshll.u32 %s761, 4
          %s773 = int_to_ptr.vmem [resolvable:$true] %s772
          %s774 = sshll.u32 %s771, 4
          %s775 = int_to_ptr.hbm [resolvable:$true] %s774
          %780 = dma.vmem_to_hbm [thread:$0]  %s773, 8192, %s775, %s758, 256, 512, 16
        $region40: #{tpu_custom_call.1} parent=31 // pred_fallthru
          _
      $region32: #{tpu_custom_call.1} parent=5 // pred_fallthru
        _
      %p781 = scmp.le.s32.totalorder 2, %s15
      // Predicated region
      $region41: #{tpu_custom_call.1} parent=5 // pred_check
        %p782 = pneg %p781
      $region42: #{tpu_custom_call.1} parent=5 // pred_check_branch
        %784 = sbr.rel (%p782) target = $region44
      $region43: #{tpu_custom_call.1} parent=5 // pred_region
        %s785 = ssub.s32 %s15, 2
        // Predicated region
        $region45: #{tpu_custom_call.1} parent=43 // pred_check
          %p786 = pneg %p128
        $region46: #{tpu_custom_call.1} parent=43 // pred_check_branch
          %788 = sbr.rel (%p786) target = $region48
        $region47: #{tpu_custom_call.1} parent=43 // pred_region
          %s789 = sand.u32 %s113, 1
          %s790 = scalar_lea.sflag [#allocation4], %s789
          %s791 = sand.u32 %s113, 1
          %s792 = smul.addr %s791, 512
          %s793 = scalar_lea.vmem [#allocation5], %s792
          %795 = dma.done %s790, 8192
        $region48: #{tpu_custom_call.1} parent=43 // pred_fallthru
          _
      $region44: #{tpu_custom_call.1} parent=5 // pred_fallthru
        _
    $region6: #{tpu_custom_call.1} parent=1 // loop_footer
      %s19 = sadd.s32 1, %s15
    $region7: #{tpu_custom_call.1} parent=1 // loop_footer_branch
      %14 = sbr.rel target = $region3
    $region8: #{tpu_custom_call.1} parent=1 // loop_exit
      _
    %796 = vsyncpa [#allocation3], 1
    %s797 = scalar_lea.sflag [#allocation3], 1
    %798 = vsyncpa %s797, 1
    %799 = vsyncpa [#allocation4], 1
    %s800 = scalar_lea.sflag [#allocation4], 1
    %801 = vsyncpa %s800, 1

</llo_original>
